<compile_context>
chip_gen: v7x
topology: tpu7x:2x2x1
jax: 0.10.0
libtpu: 0.0.40
codegen_flags: <defaults>
</compile_context>

<pallas_src>
import math

import jax
import jax.numpy as jnp
from jax import lax
from jax.experimental import pallas as pl
from jax.experimental.pallas import tpu as pltpu


def _round_up(n, m):
    return -(-n // m) * m


# ---------------------------------------------------------------------------
# Hardware queries (safe fallbacks so the script always runs).
# ---------------------------------------------------------------------------
def _vmem_capacity_bytes():
    try:
        return int(pltpu.get_tpu_info().vmem_capacity_bytes)
    except Exception:
        return 64 << 20                      # conservative: v7x per-TC VMEM


def _num_tensorcores():
    """TensorCores sharing one JAX device (megacore).  Best-effort detection."""
    try:
        kind = jax.devices()[0].device_kind.lower()
        if any(t in kind for t in ("v4", "v5p", "v7", "7x")):
            return 2
        return 1
    except Exception:
        return 1


def _lane_packing(d):
    """Rows folded per physical row so the lane width is a multiple of 128."""
    if d % 128 == 0:
        return 1
    lcm = d * 128 // math.gcd(d, 128)
    if lcm <= 512:                 # keep the in-kernel segment matmul small
        return lcm // d
    # TODO(synk): awkward dims (e.g. 80, 144, 240) fall back to masked
    # (partial-lane) stores; still correct, just not lane-dense.
    return 1


# ---------------------------------------------------------------------------
# Kernel
# ---------------------------------------------------------------------------
def _make_prenorm_kernel(*, eps, d, k, lanes_in, fused):
    """LayerNorm (single-pass f32 stats) + optional fused linear projection."""
    inv_d = 1.0 / float(d)

    def kernel(x_ref, gamma_ref, beta_ref, *rest):
        o_ref = rest[-1]
        x = x_ref[...].astype(jnp.float32)                    # (tr, lanes_in)

        if k > 1:
            # Block-diagonal "segment" matrix built in-kernel from iota
            # step-functions (integer compares only — no vector division,
            # no HBM constant, no extra double-buffered VMEM operand).
            r = lax.broadcasted_iota(jnp.int32, (lanes_in, lanes_in), 0)
            c = lax.broadcasted_iota(jnp.int32, (lanes_in, lanes_in), 1)
            row_id = jnp.zeros((lanes_in, lanes_in), jnp.int32)
            col_id = jnp.zeros((lanes_in, lanes_in), jnp.int32)
            for m in range(1, k):
                row_id = row_id + (r >= m * d).astype(jnp.int32)
                col_id = col_id + (c >= m * d).astype(jnp.int32)
            seg = (row_id == col_id).astype(jnp.float32)
            # One MXU matmul per statistic: each row's segment sum comes back
            # already broadcast to every lane of that segment.
            sum_x = jnp.dot(x, seg, preferred_element_type=jnp.float32)
            sum_x2 = jnp.dot(x * x, seg, preferred_element_type=jnp.float32)
        else:
            sum_x = jnp.sum(x, axis=-1, keepdims=True)
            sum_x2 = jnp.sum(x * x, axis=-1, keepdims=True)

        mean = sum_x * inv_d
        var = sum_x2 * inv_d - mean * mean                 # single-pass stats
        inv = lax.rsqrt(var + eps)
        y = (x - mean) * inv * gamma_ref[...].astype(jnp.float32) \
            + beta_ref[...].astype(jnp.float32)

        if fused:
            w_ref, b_ref = rest[0], rest[1]
            # Feed the MXU in the weight's own dtype (bf16 weights run at full
            # MXU rate, no per-step f32 weight cast); accumulate in f32.
            y = jnp.dot(y.astype(w_ref.dtype), w_ref[...],
                        preferred_element_type=jnp.float32) \
                + b_ref[...].astype(jnp.float32)

        o_ref[...] = y.astype(o_ref.dtype)

    return kernel


# ---------------------------------------------------------------------------
# Tiling
# ---------------------------------------------------------------------------
def _pick_tile_rows(prows, lanes_in, lanes_out, in_itemsize, out_itemsize,
                    fixed_bytes, vmem_limit, num_tc):
    """Largest row tile whose double-buffered in/out (+ f32 temps) fits the
    scoped-VMEM budget.  No artificial row cap: the budget drives the tile."""
    gran = {4: 8, 2: 16, 1: 32}.get(in_itemsize, 8)       # sublane granule
    budget = max(vmem_limit - fixed_bytes - (8 << 20), 4 << 20)
    # 2x double-buffered input + 2x double-buffered output tile, plus in-kernel
    # f32 temporaries (x, x*x, normalized y, matmul result).
    per_row = (2 * lanes_in * in_itemsize + 2 * lanes_out * out_itemsize
               + (4 * lanes_in + 2 * lanes_out) * 4)
    tr = (budget // max(per_row, 1)) // gran * gran
    tr = int(max(gran, min(tr, 32768)))

    if tr < prows:
        return tr                     # ragged tail -> Pallas boundary masking
    # Whole problem fits in one tile.
    min_steps = 2 * num_tc if num_tc > 1 else 1   # >=2 steps/core on megacore
    if min_steps > 1 and prows >= min_steps * gran:
        return _round_up(-(-prows // min_steps), gran)
    return prows         # single full-extent block (any row count is legal)


# ---------------------------------------------------------------------------
# Host-side packing + pallas_call wrapper
# ---------------------------------------------------------------------------
def _pack_norm_params(gamma, beta, d, k):
    gamma_p = jnp.asarray(gamma).reshape(1, d)
    beta_p = jnp.asarray(beta).reshape(1, d)
    if k > 1:
        gamma_p = jnp.tile(gamma_p, (1, k))
        beta_p = jnp.tile(beta_p, (1, k))
    return gamma_p, beta_p


def _pack_linear_params(w, b, d, d_out, k):
    w = jnp.asarray(w)
    if b is None:
        b = jnp.zeros((d_out,), dtype=w.dtype)
    b_p = jnp.asarray(b).reshape(1, d_out)
    if k > 1:
        # Block-diagonal weight so the packed layout feeds the MXU directly.
        w_p = jnp.einsum("ab,ij->aibj", jnp.eye(k, dtype=w.dtype), w)
        w_p = w_p.reshape(k * d, k * d_out)
        b_p = jnp.tile(b_p, (1, k))
    else:
        w_p = w
    return w_p, b_p


def _prenorm_call(x, *, d, d_out, k, gamma_p, beta_p, w_p, b_p, eps, out_dtype):
    orig_shape = x.shape
    rows = math.prod(int(s) for s in orig_shape[:-1])
    lanes_in, lanes_out = k * d, k * d_out
    fused = w_p is not None

    x2 = x.reshape(rows, d)
    prows = -(-rows // k)
    if prows * k != rows:
        # Only the tiny (< k rows) packing pad remains; the row-tile tail is
        # handled by Pallas boundary masking (grid = cdiv), not HBM padding.
        x2 = jnp.pad(x2, ((0, prows * k - rows), (0, 0)))
    xp = x2.reshape(prows, lanes_in)

    # Fixed-index operands (double-buffered by BlockSpec) and the in-kernel seg
    # temporary are charged against the VMEM budget (matters on v7x's 64 MiB).
    fixed_bytes = 2 * (gamma_p.size * gamma_p.dtype.itemsize
                       + beta_p.size * beta_p.dtype.itemsize)
    if fused:
        fixed_bytes += 2 * (w_p.size * w_p.dtype.itemsize
                            + b_p.size * b_p.dtype.itemsize)
    if k > 1:
        fixed_bytes += lanes_in * lanes_in * 4

    capacity = _vmem_capacity_bytes()
    vmem_limit = max(32 << 20, min(capacity - (16 << 20), capacity * 3 // 4))
    tr = _pick_tile_rows(prows, lanes_in, lanes_out, x.dtype.itemsize,
                         jnp.dtype(out_dtype).itemsize, fixed_bytes,
                         vmem_limit, _num_tensorcores())
    grid = (-(-prows // tr),)

    inputs = [xp, gamma_p, beta_p]
    in_specs = [
        pl.BlockSpec((tr, lanes_in), lambda i: (i, 0)),
        pl.BlockSpec((1, lanes_in), lambda i: (0, 0)),
        pl.BlockSpec((1, lanes_in), lambda i: (0, 0)),
    ]
    if fused:
        inputs += [w_p, b_p]
        in_specs += [
            pl.BlockSpec((lanes_in, lanes_out), lambda i: (0, 0)),
            pl.BlockSpec((1, lanes_out), lambda i: (0, 0)),
        ]

    kernel = _make_prenorm_kernel(eps=eps, d=d, k=k, lanes_in=lanes_in,
                                  fused=fused)

    out = pl.pallas_call(
        kernel,
        out_shape=jax.ShapeDtypeStruct((prows, lanes_out), out_dtype),
        grid_spec=pltpu.PrefetchScalarGridSpec(
            num_scalar_prefetch=0,
            grid=grid,
            in_specs=in_specs,
            out_specs=pl.BlockSpec((tr, lanes_out), lambda i: (i, 0)),
        ),
        compiler_params=pltpu.CompilerParams(
            dimension_semantics=("parallel",),
            vmem_limit_bytes=int(vmem_limit),
        ),
    )(*inputs)

    out = out.reshape(prows * k, d_out)
    if prows * k != rows:
        out = out[:rows]
    return out.reshape(orig_shape[:-1] + (d_out,))


def prenorm_pallas(x, gamma, beta, w=None, b=None, *, eps=1e-5):
    """LayerNorm over the last axis of x, optionally fused with (y @ w + b)."""
    d = int(x.shape[-1])
    k = _lane_packing(d)
    gamma_p, beta_p = _pack_norm_params(gamma, beta, d, k)
    if w is not None:
        d_out = int(w.shape[-1])
        w_p, b_p = _pack_linear_params(w, b, d, d_out, k)
    else:
        d_out, w_p, b_p = d, None, None
    return _prenorm_call(x, d=d, d_out=d_out, k=k, gamma_p=gamma_p,
                         beta_p=beta_p, w_p=w_p, b_p=b_p, eps=eps,
                         out_dtype=x.dtype)


# ---------------------------------------------------------------------------
# Module-level API (mirrors the PyTorch PreNorm)
# ---------------------------------------------------------------------------
class Linear:
    """Deterministic linear layer; PreNorm fuses this into the Pallas kernel."""

    def __init__(self, w, b):
        self.w = jnp.asarray(w)
        self.b = jnp.asarray(b)

    def __call__(self, t):
        return jnp.dot(t, self.w) + self.b


class PreNorm:
    """JAX/Pallas equivalent of the PyTorch PreNorm module."""

    def __init__(self, dim, fn, eps=1e-5):
        self.dim = int(dim)
        self.eps = float(eps)
        self.fn = fn
        # nn.LayerNorm(dim) init: weight = ones, bias = zeros (deterministic).
        self.gamma = jnp.ones((dim,), dtype=jnp.float32)
        self.beta = jnp.zeros((dim,), dtype=jnp.float32)
        # Pre-pack all kernel constants once (don't rebuild the tiled
        # gamma/beta or the k^2-inflated block-diagonal weight per call).
        self._k = _lane_packing(self.dim)
        self._gamma_p, self._beta_p = _pack_norm_params(self.gamma, self.beta,
                                                        self.dim, self._k)
        self._fused = isinstance(fn, Linear) and int(fn.w.shape[0]) == self.dim
        if self._fused:
            self._d_out = int(fn.w.shape[-1])
            self._w_p, self._b_p = _pack_linear_params(fn.w, fn.b, self.dim,
                                                       self._d_out, self._k)

    def __call__(self, x, **kwargs):
        if self._fused and not kwargs:
            # Fused LayerNorm + projection: normalized tensor never hits HBM.
            return _prenorm_call(x, d=self.dim, d_out=self._d_out, k=self._k,
                                 gamma_p=self._gamma_p, beta_p=self._beta_p,
                                 w_p=self._w_p, b_p=self._b_p, eps=self.eps,
                                 out_dtype=x.dtype)
        # TODO(synk): arbitrary fn (attention / MLP / ...) has no generic
        # Pallas fusion here; only the LayerNorm runs in the kernel.
        normed = _prenorm_call(x, d=self.dim, d_out=self.dim, k=self._k,
                               gamma_p=self._gamma_p, beta_p=self._beta_p,
                               w_p=None, b_p=None, eps=self.eps,
                               out_dtype=x.dtype)
        return self.fn(normed, **kwargs)


# ---------------------------------------------------------------------------
# Reference + tests
# ---------------------------------------------------------------------------
def _layernorm_ref(x, gamma, beta, eps):
    x = x.astype(jnp.float32)
    mean = jnp.mean(x, axis=-1, keepdims=True)
    var = jnp.mean((x - mean) ** 2, axis=-1, keepdims=True)
    return (x - mean) * lax.rsqrt(var + eps) * gamma + beta


if __name__ == "__main__":
    key = jax.random.PRNGKey(0)
    k_x, k_w, k_b, k_x2, k_w2 = jax.random.split(key, 5)
    HI = jax.lax.Precision.HIGHEST

    # ---- 1) MobileViT transformer input, fused LayerNorm + Linear (packed D=32)
    B, P, N, D = 2, 2, 8, 32
    x = jax.random.normal(k_x, (B, P, N, D), dtype=jnp.float32)
    w = jax.random.normal(k_w, (D, D), dtype=jnp.float32) * 0.02
    b = jax.random.normal(k_b, (D,), dtype=jnp.float32) * 0.02

    prenorm = PreNorm(D, Linear(w, b))
    out = jax.block_until_ready(prenorm(x))
    ref = jnp.dot(_layernorm_ref(x, prenorm.gamma, prenorm.beta, 1e-5),
                  w, precision=HI) + b
    assert out.shape == (B, P, N, D)
    assert float(jnp.max(jnp.abs(out - ref))) < 1e-2

    # ---- 2) Arbitrary fn (gelu): Pallas LayerNorm kernel + plain-JAX fn
    prenorm_gelu = PreNorm(D, jax.nn.gelu)
    out2 = jax.block_until_ready(prenorm_gelu(x))
    ref2 = jax.nn.gelu(_layernorm_ref(x, prenorm_gelu.gamma,
                                      prenorm_gelu.beta, 1e-5))
    assert float(jnp.max(jnp.abs(out2 - ref2))) < 1e-2

    # ---- 3) D = 128 (unpacked path) with a ragged row count (no wrapper pad)
    D3 = 128
    x3 = jax.random.normal(k_x2, (3, 5, D3), dtype=jnp.float32)
    w3 = jax.random.normal(k_w, (D3, D3), dtype=jnp.float32) * 0.02
    b3 = jnp.zeros((D3,), dtype=jnp.float32)
    pn3 = PreNorm(D3, Linear(w3, b3))
    out3 = jax.block_until_ready(pn3(x3))
    ref3 = jnp.dot(_layernorm_ref(x3, pn3.gamma, pn3.beta, 1e-5),
                   w3, precision=HI) + b3
    assert out3.shape == (3, 5, D3)
    assert float(jnp.max(jnp.abs(out3 - ref3))) < 1e-2

    # ---- 4) bf16 I/O (halves HBM traffic; compute stays f32 inside the kernel)
    xb = jax.random.normal(k_x2, (4, 64, D), dtype=jnp.float32).astype(jnp.bfloat16)
    pnb = PreNorm(D, Linear(w, b))
    outb = jax.block_until_ready(pnb(xb))
    refb = jnp.dot(_layernorm_ref(xb.astype(jnp.float32), pnb.gamma, pnb.beta, 1e-5),
                   w, precision=HI) + b
    assert outb.dtype == jnp.bfloat16
    assert float(jnp.max(jnp.abs(outb.astype(jnp.float32) - refb))) < 3e-2

    # ---- 5) Non-divisor MobileViT-style dim (D=96 -> lcm packing, k=4),
    #         different output dim, rows not a multiple of k (tiny pad path)
    D5, DO5 = 96, 64
    x5 = jax.random.normal(k_x2, (3, 7, D5), dtype=jnp.float32)
    w5 = jax.random.normal(k_w2, (D5, DO5), dtype=jnp.float32) * 0.02
    b5 = jax.random.normal(k_b, (DO5,), dtype=jnp.float32) * 0.02
    pn5 = PreNorm(D5, Linear(w5, b5))
    out5 = jax.block_until_ready(pn5(x5))
    ref5 = jnp.dot(_layernorm_ref(x5, pn5.gamma, pn5.beta, 1e-5),
                   w5, precision=HI) + b5
    assert out5.shape == (3, 7, DO5)
    assert float(jnp.max(jnp.abs(out5 - ref5))) < 1e-2

    print("KERNEL_OK")
</pallas_src>

<mosaic_0001>
module attributes {stable_mosaic.version = 11 : i64} {
  func.func @kernel(%arg0: i32, %arg1: memref<8x128xf32, #tpu.memory_space<vmem>>, %arg2: memref<1x128xf32, #tpu.memory_space<vmem>>, %arg3: memref<1x128xf32, #tpu.memory_space<vmem>>, %arg4: memref<128x128xf32, #tpu.memory_space<vmem>>, %arg5: memref<1x128xf32, #tpu.memory_space<vmem>>, %arg6: memref<8x128xf32, #tpu.memory_space<vmem>>) attributes {dimension_semantics = [#tpu.dimension_semantics<parallel>], iteration_bounds = array<i64: 1>, scalar_prefetch = 0 : i64, scratch_operands = 0 : i64, tpu.core_type = #tpu.core_type<tc>, window_params = [{transform_indices = @transform_0, window_bounds = array<i64: 8, 128>}, {pipeline_mode = #tpu.pipeline_mode<synchronous>, transform_indices = @transform_1, window_bounds = array<i64: 1, 128>}, {pipeline_mode = #tpu.pipeline_mode<synchronous>, transform_indices = @transform_2, window_bounds = array<i64: 1, 128>}, {pipeline_mode = #tpu.pipeline_mode<synchronous>, transform_indices = @transform_3, window_bounds = array<i64: 128, 128>}, {pipeline_mode = #tpu.pipeline_mode<synchronous>, transform_indices = @transform_4, window_bounds = array<i64: 1, 128>}, {transform_indices = @transform_5, window_bounds = array<i64: 8, 128>}]} {
    %c0 = arith.constant 0 : index
    %c0_0 = arith.constant 0 : index
    %0 = vector.load %arg1[%c0, %c0_0] : memref<8x128xf32, #tpu.memory_space<vmem>>, vector<8x128xf32>
    %1 = tpu.iota {dimensions = array<i32: 0>} : vector<128x128xi32>
    %2 = tpu.iota {dimensions = array<i32: 1>} : vector<128x128xi32>
    %c0_i32 = arith.constant 0 : i32
    %3 = vector.broadcast %c0_i32 : i32 to vector<128x128xi32>
    %c0_i32_1 = arith.constant 0 : i32
    %4 = vector.broadcast %c0_i32_1 : i32 to vector<128x128xi32>
    %c32_i32 = arith.constant 32 : i32
    %5 = vector.broadcast %c32_i32 : i32 to vector<128x128xi32>
    %6 = arith.cmpi sge, %1, %5 : vector<128x128xi32>
    %7 = arith.extui %6 : vector<128x128xi1> to vector<128x128xi32>
    %8 = arith.addi %3, %7 : vector<128x128xi32>
    %c32_i32_2 = arith.constant 32 : i32
    %9 = vector.broadcast %c32_i32_2 : i32 to vector<128x128xi32>
    %10 = arith.cmpi sge, %2, %9 : vector<128x128xi32>
    %11 = arith.extui %10 : vector<128x128xi1> to vector<128x128xi32>
    %12 = arith.addi %4, %11 : vector<128x128xi32>
    %c64_i32 = arith.constant 64 : i32
    %13 = vector.broadcast %c64_i32 : i32 to vector<128x128xi32>
    %14 = arith.cmpi sge, %1, %13 : vector<128x128xi32>
    %15 = arith.extui %14 : vector<128x128xi1> to vector<128x128xi32>
    %16 = arith.addi %8, %15 : vector<128x128xi32>
    %c64_i32_3 = arith.constant 64 : i32
    %17 = vector.broadcast %c64_i32_3 : i32 to vector<128x128xi32>
    %18 = arith.cmpi sge, %2, %17 : vector<128x128xi32>
    %19 = arith.extui %18 : vector<128x128xi1> to vector<128x128xi32>
    %20 = arith.addi %12, %19 : vector<128x128xi32>
    %c96_i32 = arith.constant 96 : i32
    %21 = vector.broadcast %c96_i32 : i32 to vector<128x128xi32>
    %22 = arith.cmpi sge, %1, %21 : vector<128x128xi32>
    %23 = arith.extui %22 : vector<128x128xi1> to vector<128x128xi32>
    %24 = arith.addi %16, %23 : vector<128x128xi32>
    %c96_i32_4 = arith.constant 96 : i32
    %25 = vector.broadcast %c96_i32_4 : i32 to vector<128x128xi32>
    %26 = arith.cmpi sge, %2, %25 : vector<128x128xi32>
    %27 = arith.extui %26 : vector<128x128xi1> to vector<128x128xi32>
    %28 = arith.addi %20, %27 : vector<128x128xi32>
    %29 = arith.cmpi eq, %24, %28 : vector<128x128xi32>
    %30 = arith.extui %29 : vector<128x128xi1> to vector<128x128xi32>
    %31 = arith.sitofp %30 : vector<128x128xi32> to vector<128x128xf32>
    %cst = arith.constant dense<0.000000e+00> : vector<8x128xf32>
    %32 = tpu.matmul %0, %31, %cst {dimension_numbers = #tpu.dot_dimension_numbers<[1], [0], [0], [1], [0, 0, 1, 1], [], []>} : vector<8x128xf32>, vector<128x128xf32>, vector<8x128xf32> -> vector<8x128xf32>
    %33 = arith.mulf %0, %0 : vector<8x128xf32>
    %cst_5 = arith.constant dense<0.000000e+00> : vector<8x128xf32>
    %34 = tpu.matmul %33, %31, %cst_5 {dimension_numbers = #tpu.dot_dimension_numbers<[1], [0], [0], [1], [0, 0, 1, 1], [], []>} : vector<8x128xf32>, vector<128x128xf32>, vector<8x128xf32> -> vector<8x128xf32>
    %cst_6 = arith.constant 3.125000e-02 : f32
    %35 = vector.broadcast %cst_6 : f32 to vector<8x128xf32>
    %36 = arith.mulf %32, %35 : vector<8x128xf32>
    %cst_7 = arith.constant 3.125000e-02 : f32
    %37 = vector.broadcast %cst_7 : f32 to vector<8x128xf32>
    %38 = arith.mulf %34, %37 : vector<8x128xf32>
    %39 = arith.mulf %36, %36 : vector<8x128xf32>
    %40 = arith.subf %38, %39 : vector<8x128xf32>
    %cst_8 = arith.constant 9.99999974E-6 : f32
    %41 = vector.broadcast %cst_8 : f32 to vector<8x128xf32>
    %42 = arith.addf %40, %41 : vector<8x128xf32>
    %43 = math.rsqrt %42 : vector<8x128xf32>
    %44 = arith.subf %0, %36 : vector<8x128xf32>
    %45 = arith.mulf %44, %43 : vector<8x128xf32>
    %c0_9 = arith.constant 0 : index
    %c0_10 = arith.constant 0 : index
    %46 = vector.load %arg2[%c0_9, %c0_10] : memref<1x128xf32, #tpu.memory_space<vmem>>, vector<1x128xf32>
    %47 = vector.broadcast %46 : vector<1x128xf32> to vector<8x128xf32>
    %48 = arith.mulf %45, %47 : vector<8x128xf32>
    %c0_11 = arith.constant 0 : index
    %c0_12 = arith.constant 0 : index
    %49 = vector.load %arg3[%c0_11, %c0_12] : memref<1x128xf32, #tpu.memory_space<vmem>>, vector<1x128xf32>
    %50 = vector.broadcast %49 : vector<1x128xf32> to vector<8x128xf32>
    %51 = arith.addf %48, %50 : vector<8x128xf32>
    %c0_13 = arith.constant 0 : index
    %c0_14 = arith.constant 0 : index
    %52 = vector.load %arg4[%c0_13, %c0_14] : memref<128x128xf32, #tpu.memory_space<vmem>>, vector<128x128xf32>
    %cst_15 = arith.constant dense<0.000000e+00> : vector<8x128xf32>
    %53 = tpu.matmul %51, %52, %cst_15 {dimension_numbers = #tpu.dot_dimension_numbers<[1], [0], [0], [1], [0, 0, 1, 1], [], []>} : vector<8x128xf32>, vector<128x128xf32>, vector<8x128xf32> -> vector<8x128xf32>
    %c0_16 = arith.constant 0 : index
    %c0_17 = arith.constant 0 : index
    %54 = vector.load %arg5[%c0_16, %c0_17] : memref<1x128xf32, #tpu.memory_space<vmem>>, vector<1x128xf32>
    %55 = vector.broadcast %54 : vector<1x128xf32> to vector<8x128xf32>
    %56 = arith.addf %53, %55 : vector<8x128xf32>
    %c0_18 = arith.constant 0 : index
    %c0_19 = arith.constant 0 : index
    %57 = vector.load %arg6[%c0_18, %c0_19] : memref<8x128xf32, #tpu.memory_space<vmem>>, vector<8x128xf32>
    tpu.vector_store %arg6[%c0_18, %c0_19], %56 {strides = array<i32>} : memref<8x128xf32, #tpu.memory_space<vmem>>, vector<8x128xf32>,
    return
  }
  func.func @transform_0(%arg0: i32) -> (i32, i32) {
    %c0_i32 = arith.constant 0 : i32
    %c0_i32_0 = arith.constant 0 : i32
    return %arg0, %c0_i32 : i32, i32
  }
  func.func @transform_1(%arg0: i32) -> (i32, i32) {
    %c0_i32 = arith.constant 0 : i32
    %c0_i32_0 = arith.constant 0 : i32
    %c0_i32_1 = arith.constant 0 : i32
    return %c0_i32, %c0_i32_0 : i32, i32
  }
  func.func @transform_2(%arg0: i32) -> (i32, i32) {
    %c0_i32 = arith.constant 0 : i32
    %c0_i32_0 = arith.constant 0 : i32
    %c0_i32_1 = arith.constant 0 : i32
    return %c0_i32, %c0_i32_0 : i32, i32
  }
  func.func @transform_3(%arg0: i32) -> (i32, i32) {
    %c0_i32 = arith.constant 0 : i32
    %c0_i32_0 = arith.constant 0 : i32
    %c0_i32_1 = arith.constant 0 : i32
    return %c0_i32, %c0_i32_0 : i32, i32
  }
  func.func @transform_4(%arg0: i32) -> (i32, i32) {
    %c0_i32 = arith.constant 0 : i32
    %c0_i32_0 = arith.constant 0 : i32
    %c0_i32_1 = arith.constant 0 : i32
    return %c0_i32, %c0_i32_0 : i32, i32
  }
  func.func @transform_5(%arg0: i32) -> (i32, i32) {
    %c0_i32 = arith.constant 0 : i32
    %c0_i32_0 = arith.constant 0 : i32
    return %arg0, %c0_i32 : i32, i32
  }
}

</mosaic_0001>

<llo_original>
// kernel: tpu_custom_call.1
$region0: #{tpu_custom_call.1}
  #allocation0 [shape = 'u32[]', space=smem, size = 0x4, offset = 0x4, fixed_abs, tag = 'smem constant byte address 0x4 - core index']
  #allocation1 [shape = 'u32[144,128]{1,0:T(1,128)}', space=vmem, size = 0x12000, scoped, tag = 'internal scratch']
  %s0 = inlined_call_operand.hbm [shape: f32[8,128], index: 0, kind: input, shape index: {}]
  %s1 = inlined_call_operand.vmem [shape: f32[1,128], index: 1, kind: input, shape index: {}]
  %s2 = inlined_call_operand.vmem [shape: f32[1,128], index: 2, kind: input, shape index: {}]
  %s3 = inlined_call_operand.hbm [shape: f32[128,128], index: 3, kind: input, shape index: {}]
  %s4 = inlined_call_operand.vmem [shape: f32[1,128], index: 4, kind: input, shape index: {}]
  %s5 = inlined_call_operand.hbm [shape: f32[8,128], index: 5, kind: output, shape index: {}]
  %s6 = sld [smem:[#allocation0]]
  $region38: #{tpu_custom_call.1} parent=0
    _
  %s8 = ssub.s32 1, %s6
  %s9 = scalar_select 0, %s8, %s6
  $region1: #{tpu_custom_call.1} parent=0
    #allocation2 [shape = 'u8[4096]{0}', space=vmem, size = 0x1000, scoped, tag = 'input window, operand 0, single buffered']
    #allocation3 [shape = 's32[1]{0}', space=sflag, size = 0x4, scoped, tag = 'scoped memory for tpu_custom_call.1']
    #allocation4 [shape = 's32[1]{0}', space=sflag, size = 0x4, scoped, tag = 'scoped memory for tpu_custom_call.1']
    #allocation5 [shape = 'u8[65536]{0}', space=vmem, size = 0x10000, scoped, tag = 'input window, operand 3, single buffered']
    #allocation6 [shape = 's32[1]{0}', space=sflag, size = 0x4, scoped, tag = 'scoped memory for tpu_custom_call.1']
    #allocation7 [shape = 'u8[4096]{0}', space=vmem, size = 0x1000, scoped, tag = 'output window, operand 0, single buffered']
    %10 = vsyncpa [#allocation3], 0
    %11 = vsyncpa [#allocation6], 0
    %12 = vsyncpa [#allocation4], 0
    // Predicated region
    $region2: #{tpu_custom_call.1} parent=1 // pred_check
      _
    $region3: #{tpu_custom_call.1} parent=1 // pred_check_branch
      %14 = sbr.rel (0) target = $region5
    $region4: #{tpu_custom_call.1} parent=1 // pred_region
      %s16 = ssub.s32 128, 128
      %17 = vsyncadd [#allocation3], %s16
      %s19 = sshll.u32 [#allocation2], 4
      %s20 = int_to_ptr.vmem [resolvable:$true] %s19
      %22 = dma.hbm_to_vmem [thread:$0]  %s0, 128, %s20, [#allocation3]
    $region5: #{tpu_custom_call.1} parent=1 // pred_fallthru
      _
    // Predicated region
    $region6: #{tpu_custom_call.1} parent=1 // pred_check
      _
    $region7: #{tpu_custom_call.1} parent=1 // pred_check_branch
      %24 = sbr.rel (0) target = $region9
    $region8: #{tpu_custom_call.1} parent=1 // pred_region
      _
    $region9: #{tpu_custom_call.1} parent=1 // pred_fallthru
      _
    // Predicated region
    $region10: #{tpu_custom_call.1} parent=1 // pred_check
      _
    $region11: #{tpu_custom_call.1} parent=1 // pred_check_branch
      %26 = sbr.rel (0) target = $region13
    $region12: #{tpu_custom_call.1} parent=1 // pred_region
      _
    $region13: #{tpu_custom_call.1} parent=1 // pred_fallthru
      _
    // Predicated region
    $region14: #{tpu_custom_call.1} parent=1 // pred_check
      _
    $region15: #{tpu_custom_call.1} parent=1 // pred_check_branch
      %28 = sbr.rel (0) target = $region17
    $region16: #{tpu_custom_call.1} parent=1 // pred_region
      %s30 = ssub.s32 2048, 2048
      %31 = vsyncadd [#allocation6], %s30
      %s32 = sshll.u32 [#allocation5], 4
      %s33 = int_to_ptr.vmem [resolvable:$true] %s32
      %38 = dma.hbm_to_vmem [thread:$0]  %s3, 2048, %s33, [#allocation6], 128, 128, 8
    $region17: #{tpu_custom_call.1} parent=1 // pred_fallthru
      _
    // Predicated region
    $region18: #{tpu_custom_call.1} parent=1 // pred_check
      _
    $region19: #{tpu_custom_call.1} parent=1 // pred_check_branch
      %40 = sbr.rel (0) target = $region21
    $region20: #{tpu_custom_call.1} parent=1 // pred_region
      _
    $region21: #{tpu_custom_call.1} parent=1 // pred_fallthru
      _
    // Predicated region
    $region22: #{tpu_custom_call.1} parent=1 // pred_check
      _
    $region23: #{tpu_custom_call.1} parent=1 // pred_check_branch
      %42 = sbr.rel (0) target = $region25
    $region24: #{tpu_custom_call.1} parent=1 // pred_region
      %43 = dma.done [#allocation3], 128
    $region25: #{tpu_custom_call.1} parent=1 // pred_fallthru
      _
    // Predicated region
    $region26: #{tpu_custom_call.1} parent=1 // pred_check
      _
    $region27: #{tpu_custom_call.1} parent=1 // pred_check_branch
      %45 = sbr.rel (0) target = $region29
    $region28: #{tpu_custom_call.1} parent=1 // pred_region
      %46 = dma.done [#allocation6], 2048
    $region29: #{tpu_custom_call.1} parent=1 // pred_fallthru
      _
    %v47 = vld [vmem:[#allocation2] sm:$0xff]
    %v48 = vlaneseq
    %v49 = vshrl.u32 %v48, 7
    %v50 = vadd.s32 %v49, 8
    %v51 = vadd.s32 %v49, 16
    %v52 = vadd.s32 %v49, 24
    %v53 = vadd.s32 %v49, 32
    %v54 = vadd.s32 %v49, 40
    %v55 = vadd.s32 %v49, 48
    %v56 = vadd.s32 %v49, 56
    %v57 = vadd.s32 %v49, 64
    %v58 = vadd.s32 %v49, 72
    %v59 = vadd.s32 %v49, 80
    %v60 = vadd.s32 %v49, 88
    %v61 = vadd.s32 %v49, 96
    %v62 = vadd.s32 %v49, 104
    %v63 = vadd.s32 %v49, 112
    %v64 = vadd.s32 %v49, 120
    %v65 = vlaneseq
    %v66 = vand.u32 %v65, 127
    %vm67 = vcmp.ge.s32.totalorder %v49, 32
    %vm68 = vcmp.ge.s32.totalorder %v50, 32
    %vm69 = vcmp.ge.s32.totalorder %v51, 32
    %vm70 = vcmp.ge.s32.totalorder %v52, 32
    %vm71 = vcmp.ge.s32.totalorder %v53, 32
    %vm72 = vcmp.ge.s32.totalorder %v54, 32
    %vm73 = vcmp.ge.s32.totalorder %v55, 32
    %vm74 = vcmp.ge.s32.totalorder %v56, 32
    %vm75 = vcmp.ge.s32.totalorder %v57, 32
    %vm76 = vcmp.ge.s32.totalorder %v58, 32
    %vm77 = vcmp.ge.s32.totalorder %v59, 32
    %vm78 = vcmp.ge.s32.totalorder %v60, 32
    %vm79 = vcmp.ge.s32.totalorder %v61, 32
    %vm80 = vcmp.ge.s32.totalorder %v62, 32
    %vm81 = vcmp.ge.s32.totalorder %v63, 32
    %vm82 = vcmp.ge.s32.totalorder %v64, 32
    %v83 = vsel %vm67, 1, 0
    %v84 = vsel %vm68, 1, 0
    %v85 = vsel %vm69, 1, 0
    %v86 = vsel %vm70, 1, 0
    %v87 = vsel %vm71, 1, 0
    %v88 = vsel %vm72, 1, 0
    %v89 = vsel %vm73, 1, 0
    %v90 = vsel %vm74, 1, 0
    %v91 = vsel %vm75, 1, 0
    %v92 = vsel %vm76, 1, 0
    %v93 = vsel %vm77, 1, 0
    %v94 = vsel %vm78, 1, 0
    %v95 = vsel %vm79, 1, 0
    %v96 = vsel %vm80, 1, 0
    %v97 = vsel %vm81, 1, 0
    %v98 = vsel %vm82, 1, 0
    %vm99 = vcmp.ge.s32.totalorder %v66, 32
    %v100 = vsel %vm99, 1, 0
    %vm101 = vcmp.ge.s32.totalorder %v49, 64
    %vm102 = vcmp.ge.s32.totalorder %v50, 64
    %vm103 = vcmp.ge.s32.totalorder %v51, 64
    %vm104 = vcmp.ge.s32.totalorder %v52, 64
    %vm105 = vcmp.ge.s32.totalorder %v53, 64
    %vm106 = vcmp.ge.s32.totalorder %v54, 64
    %vm107 = vcmp.ge.s32.totalorder %v55, 64
    %vm108 = vcmp.ge.s32.totalorder %v56, 64
    %vm109 = vcmp.ge.s32.totalorder %v57, 64
    %vm110 = vcmp.ge.s32.totalorder %v58, 64
    %vm111 = vcmp.ge.s32.totalorder %v59, 64
    %vm112 = vcmp.ge.s32.totalorder %v60, 64
    %vm113 = vcmp.ge.s32.totalorder %v61, 64
    %vm114 = vcmp.ge.s32.totalorder %v62, 64
    %vm115 = vcmp.ge.s32.totalorder %v63, 64
    %vm116 = vcmp.ge.s32.totalorder %v64, 64
    %v117 = vsel %vm101, 1, 0
    %v118 = vsel %vm102, 1, 0
    %v119 = vsel %vm103, 1, 0
    %v120 = vsel %vm104, 1, 0
    %v121 = vsel %vm105, 1, 0
    %v122 = vsel %vm106, 1, 0
    %v123 = vsel %vm107, 1, 0
    %v124 = vsel %vm108, 1, 0
    %v125 = vsel %vm109, 1, 0
    %v126 = vsel %vm110, 1, 0
    %v127 = vsel %vm111, 1, 0
    %v128 = vsel %vm112, 1, 0
    %v129 = vsel %vm113, 1, 0
    %v130 = vsel %vm114, 1, 0
    %v131 = vsel %vm115, 1, 0
    %v132 = vsel %vm116, 1, 0
    %v133 = vadd.s32 %v83, %v117
    %v134 = vadd.s32 %v84, %v118
    %v135 = vadd.s32 %v85, %v119
    %v136 = vadd.s32 %v86, %v120
    %v137 = vadd.s32 %v87, %v121
    %v138 = vadd.s32 %v88, %v122
    %v139 = vadd.s32 %v89, %v123
    %v140 = vadd.s32 %v90, %v124
    %v141 = vadd.s32 %v91, %v125
    %v142 = vadd.s32 %v92, %v126
    %v143 = vadd.s32 %v93, %v127
    %v144 = vadd.s32 %v94, %v128
    %v145 = vadd.s32 %v95, %v129
    %v146 = vadd.s32 %v96, %v130
    %v147 = vadd.s32 %v97, %v131
    %v148 = vadd.s32 %v98, %v132
    %vm149 = vcmp.ge.s32.totalorder %v66, 64
    %v150 = vsel %vm149, 1, 0
    %v151 = vadd.s32 %v100, %v150
    %vm152 = vcmp.ge.s32.totalorder %v49, 96
    %vm153 = vcmp.ge.s32.totalorder %v50, 96
    %vm154 = vcmp.ge.s32.totalorder %v51, 96
    %vm155 = vcmp.ge.s32.totalorder %v52, 96
    %vm156 = vcmp.ge.s32.totalorder %v53, 96
    %vm157 = vcmp.ge.s32.totalorder %v54, 96
    %vm158 = vcmp.ge.s32.totalorder %v55, 96
    %vm159 = vcmp.ge.s32.totalorder %v56, 96
    %vm160 = vcmp.ge.s32.totalorder %v57, 96
    %vm161 = vcmp.ge.s32.totalorder %v58, 96
    %vm162 = vcmp.ge.s32.totalorder %v59, 96
    %vm163 = vcmp.ge.s32.totalorder %v60, 96
    %vm164 = vcmp.ge.s32.totalorder %v61, 96
    %vm165 = vcmp.ge.s32.totalorder %v62, 96
    %vm166 = vcmp.ge.s32.totalorder %v63, 96
    %vm167 = vcmp.ge.s32.totalorder %v64, 96
    %v168 = vsel %vm152, 1, 0
    %v169 = vsel %vm153, 1, 0
    %v170 = vsel %vm154, 1, 0
    %v171 = vsel %vm155, 1, 0
    %v172 = vsel %vm156, 1, 0
    %v173 = vsel %vm157, 1, 0
    %v174 = vsel %vm158, 1, 0
    %v175 = vsel %vm159, 1, 0
    %v176 = vsel %vm160, 1, 0
    %v177 = vsel %vm161, 1, 0
    %v178 = vsel %vm162, 1, 0
    %v179 = vsel %vm163, 1, 0
    %v180 = vsel %vm164, 1, 0
    %v181 = vsel %vm165, 1, 0
    %v182 = vsel %vm166, 1, 0
    %v183 = vsel %vm167, 1, 0
    %v184 = vadd.s32 %v133, %v168
    %v185 = vadd.s32 %v134, %v169
    %v186 = vadd.s32 %v135, %v170
    %v187 = vadd.s32 %v136, %v171
    %v188 = vadd.s32 %v137, %v172
    %v189 = vadd.s32 %v138, %v173
    %v190 = vadd.s32 %v139, %v174
    %v191 = vadd.s32 %v140, %v175
    %v192 = vadd.s32 %v141, %v176
    %v193 = vadd.s32 %v142, %v177
    %v194 = vadd.s32 %v143, %v178
    %v195 = vadd.s32 %v144, %v179
    %v196 = vadd.s32 %v145, %v180
    %v197 = vadd.s32 %v146, %v181
    %v198 = vadd.s32 %v147, %v182
    %v199 = vadd.s32 %v148, %v183
    %vm200 = vcmp.ge.s32.totalorder %v66, 96
    %v201 = vsel %vm200, 1, 0
    %v202 = vadd.s32 %v151, %v201
    %vm203 = vcmp.eq.s32.totalorder %v184, %v202
    %vm204 = vcmp.eq.s32.totalorder %v185, %v202
    %vm205 = vcmp.eq.s32.totalorder %v186, %v202
    %vm206 = vcmp.eq.s32.totalorder %v187, %v202
    %vm207 = vcmp.eq.s32.totalorder %v188, %v202
    %vm208 = vcmp.eq.s32.totalorder %v189, %v202
    %vm209 = vcmp.eq.s32.totalorder %v190, %v202
    %vm210 = vcmp.eq.s32.totalorder %v191, %v202
    %vm211 = vcmp.eq.s32.totalorder %v192, %v202
    %vm212 = vcmp.eq.s32.totalorder %v193, %v202
    %vm213 = vcmp.eq.s32.totalorder %v194, %v202
    %vm214 = vcmp.eq.s32.totalorder %v195, %v202
    %vm215 = vcmp.eq.s32.totalorder %v196, %v202
    %vm216 = vcmp.eq.s32.totalorder %v197, %v202
    %vm217 = vcmp.eq.s32.totalorder %v198, %v202
    %vm218 = vcmp.eq.s32.totalorder %v199, %v202
    %v219 = vsel %vm203, 1, 0
    %v220 = vsel %vm204, 1, 0
    %v221 = vsel %vm205, 1, 0
    %v222 = vsel %vm206, 1, 0
    %v223 = vsel %vm207, 1, 0
    %v224 = vsel %vm208, 1, 0
    %v225 = vsel %vm209, 1, 0
    %v226 = vsel %vm210, 1, 0
    %v227 = vsel %vm211, 1, 0
    %v228 = vsel %vm212, 1, 0
    %v229 = vsel %vm213, 1, 0
    %v230 = vsel %vm214, 1, 0
    %v231 = vsel %vm215, 1, 0
    %v232 = vsel %vm216, 1, 0
    %v233 = vsel %vm217, 1, 0
    %v234 = vsel %vm218, 1, 0
    %v235 = vcvt.s32.f32 %v219
    %v236 = vcvt.s32.f32 %v220
    %v237 = vcvt.s32.f32 %v221
    %v238 = vcvt.s32.f32 %v222
    %v239 = vcvt.s32.f32 %v223
    %v240 = vcvt.s32.f32 %v224
    %v241 = vcvt.s32.f32 %v225
    %v242 = vcvt.s32.f32 %v226
    %v243 = vcvt.s32.f32 %v227
    %v244 = vcvt.s32.f32 %v228
    %v245 = vcvt.s32.f32 %v229
    %v246 = vcvt.s32.f32 %v230
    %v247 = vcvt.s32.f32 %v231
    %v248 = vcvt.s32.f32 %v232
    %v249 = vcvt.s32.f32 %v233
    %v250 = vcvt.s32.f32 %v234
    %251 = vmatprep.subr.mxu0 0.0
    %252 = vmatpush1.msra.mxu0 %v235
    %253 = vmatprep.subr.mxu0 0.0
    %254 = vmatpush1.msra.mxu0 %v236
    %255 = vmatprep.subr.mxu0 0.0
    %256 = vmatpush1.msra.mxu0 %v237
    %257 = vmatprep.subr.mxu0 0.0
    %258 = vmatpush1.msra.mxu0 %v238
    %259 = vmatprep.subr.mxu0 0.0
    %260 = vmatpush1.msra.mxu0 %v239
    %261 = vmatprep.subr.mxu0 0.0
    %262 = vmatpush1.msra.mxu0 %v240
    %263 = vmatprep.subr.mxu0 0.0
    %264 = vmatpush1.msra.mxu0 %v241
    %265 = vmatprep.subr.mxu0 0.0
    %266 = vmatpush1.msra.mxu0 %v242
    %267 = vmatprep.subr.mxu0 0.0
    %268 = vmatpush1.msra.mxu0 %v243
    %269 = vmatprep.subr.mxu0 0.0
    %270 = vmatpush1.msra.mxu0 %v244
    %271 = vmatprep.subr.mxu0 0.0
    %272 = vmatpush1.msra.mxu0 %v245
    %273 = vmatprep.subr.mxu0 0.0
    %274 = vmatpush1.msra.mxu0 %v246
    %275 = vmatprep.subr.mxu0 0.0
    %276 = vmatpush1.msra.mxu0 %v247
    %277 = vmatprep.subr.mxu0 0.0
    %278 = vmatpush1.msra.mxu0 %v248
    %279 = vmatprep.subr.mxu0 0.0
    %280 = vmatpush1.msra.mxu0 %v249
    %281 = vmatprep.subr.mxu0 0.0
    %282 = vmatpush1.msra.mxu0 %v250
    %283 = vmatprep.subr.mxu0 0.0
    %284 = vmatpush1.msra.mxu0 0.0
    %285 = vmatprep.subr.mxu0 0.0
    %286 = vmatpush1.msra.mxu0 0.0
    %287 = vmatprep.subr.mxu0 0.0
    %288 = vmatpush1.msra.mxu0 0.0
    %289 = vmatprep.subr.mxu0 0.0
    %290 = vmatpush1.msra.mxu0 0.0
    %291 = vmatprep.subr.mxu0 0.0
    %292 = vmatpush1.msra.mxu0 0.0
    %293 = vmatprep.subr.mxu0 0.0
    %294 = vmatpush1.msra.mxu0 0.0
    %295 = vmatprep.subr.mxu0 0.0
    %296 = vmatpush1.msra.mxu0 0.0
    %297 = vmatprep.subr.mxu0 0.0
    %298 = vmatpush1.msra.mxu0 0.0
    %299 = vmatprep.subr.mxu0 0.0
    %300 = vmatpush1.msra.mxu0 0.0
    %301 = vmatprep.subr.mxu0 0.0
    %302 = vmatpush1.msra.mxu0 0.0
    %303 = vmatprep.subr.mxu0 0.0
    %304 = vmatpush1.msra.mxu0 0.0
    %305 = vmatprep.subr.mxu0 0.0
    %306 = vmatpush1.msra.mxu0 0.0
    %307 = vmatprep.subr.mxu0 0.0
    %308 = vmatpush1.msra.mxu0 0.0
    %309 = vmatprep.subr.mxu0 0.0
    %310 = vmatpush1.msra.mxu0 0.0
    %311 = vmatprep.subr.mxu0 0.0
    %312 = vmatpush1.msra.mxu0 0.0
    %313 = vmatprep.subr.mxu0 0.0
    %314 = vmatpush1.msra.mxu0 0.0
    %315 = vmatprep.mubr.f32.mxu0 0.0
    %316 = vmatmul.mubr.f32.gmra.mrb[0].mxu0 %v47
    %v317 = vpop.f32.mrb[0].mxu0
    %v318 = vadd.f32 0.0, %v317
    %v319 = vpop.f32.mrb[0].mxu0
    %320 = vdwg.mxu0
    %v321 = vmul.f32 %v47, %v47
    %322 = vmatprep.subr.mxu0 0.0
    %323 = vmatpush1.msra.mxu0 %v235
    %324 = vmatprep.subr.mxu0 0.0
    %325 = vmatpush1.msra.mxu0 %v236
    %326 = vmatprep.subr.mxu0 0.0
    %327 = vmatpush1.msra.mxu0 %v237
    %328 = vmatprep.subr.mxu0 0.0
    %329 = vmatpush1.msra.mxu0 %v238
    %330 = vmatprep.subr.mxu0 0.0
    %331 = vmatpush1.msra.mxu0 %v239
    %332 = vmatprep.subr.mxu0 0.0
    %333 = vmatpush1.msra.mxu0 %v240
    %334 = vmatprep.subr.mxu0 0.0
    %335 = vmatpush1.msra.mxu0 %v241
    %336 = vmatprep.subr.mxu0 0.0
    %337 = vmatpush1.msra.mxu0 %v242
    %338 = vmatprep.subr.mxu0 0.0
    %339 = vmatpush1.msra.mxu0 %v243
    %340 = vmatprep.subr.mxu0 0.0
    %341 = vmatpush1.msra.mxu0 %v244
    %342 = vmatprep.subr.mxu0 0.0
    %343 = vmatpush1.msra.mxu0 %v245
    %344 = vmatprep.subr.mxu0 0.0
    %345 = vmatpush1.msra.mxu0 %v246
    %346 = vmatprep.subr.mxu0 0.0
    %347 = vmatpush1.msra.mxu0 %v247
    %348 = vmatprep.subr.mxu0 0.0
    %349 = vmatpush1.msra.mxu0 %v248
    %350 = vmatprep.subr.mxu0 0.0
    %351 = vmatpush1.msra.mxu0 %v249
    %352 = vmatprep.subr.mxu0 0.0
    %353 = vmatpush1.msra.mxu0 %v250
    %354 = vmatprep.subr.mxu0 0.0
    %355 = vmatpush1.msra.mxu0 0.0
    %356 = vmatprep.subr.mxu0 0.0
    %357 = vmatpush1.msra.mxu0 0.0
    %358 = vmatprep.subr.mxu0 0.0
    %359 = vmatpush1.msra.mxu0 0.0
    %360 = vmatprep.subr.mxu0 0.0
    %361 = vmatpush1.msra.mxu0 0.0
    %362 = vmatprep.subr.mxu0 0.0
    %363 = vmatpush1.msra.mxu0 0.0
    %364 = vmatprep.subr.mxu0 0.0
    %365 = vmatpush1.msra.mxu0 0.0
    %366 = vmatprep.subr.mxu0 0.0
    %367 = vmatpush1.msra.mxu0 0.0
    %368 = vmatprep.subr.mxu0 0.0
    %369 = vmatpush1.msra.mxu0 0.0
    %370 = vmatprep.subr.mxu0 0.0
    %371 = vmatpush1.msra.mxu0 0.0
    %372 = vmatprep.subr.mxu0 0.0
    %373 = vmatpush1.msra.mxu0 0.0
    %374 = vmatprep.subr.mxu0 0.0
    %375 = vmatpush1.msra.mxu0 0.0
    %376 = vmatprep.subr.mxu0 0.0
    %377 = vmatpush1.msra.mxu0 0.0
    %378 = vmatprep.subr.mxu0 0.0
    %379 = vmatpush1.msra.mxu0 0.0
    %380 = vmatprep.subr.mxu0 0.0
    %381 = vmatpush1.msra.mxu0 0.0
    %382 = vmatprep.subr.mxu0 0.0
    %383 = vmatpush1.msra.mxu0 0.0
    %384 = vmatprep.subr.mxu0 0.0
    %385 = vmatpush1.msra.mxu0 0.0
    %386 = vmatprep.mubr.f32.mxu0 0.0
    %387 = vmatmul.mubr.f32.gmra.mrb[0].mxu0 %v321
    %v388 = vpop.f32.mrb[0].mxu0
    %v389 = vadd.f32 0.0, %v388
    %v390 = vpop.f32.mrb[0].mxu0
    %391 = vdwg.mxu0
    %v392 = vmul.f32 %v318, 0.03125
    %v393 = vmul.f32 %v389, 0.03125
    %v394 = vmul.f32 %v392, %v392
    %v395 = vsub.f32 %v393, %v394
    %v396 = vadd.f32 %v395, 1e-05
    %v397 = vrsqrt.pop %v396
    %v398 = vsub.f32 %v47, %v392
    %v399 = vmul.f32 %v398, %v397
    %v400 = vld [vmem:[%s1] sm:$0x1]
    %v402 = vlaneseq
    %v403 = vshrl.u32 %v402, 7
    %v404 = vsub.s32 0, %v403
    %v405 = vrot.slane %v400, %v404
    %v407 = vmul.f32 %v399, %v405
    %v408 = vld [vmem:[%s2] sm:$0x1]
    %v410 = vlaneseq
    %v411 = vshrl.u32 %v410, 7
    %v412 = vsub.s32 0, %v411
    %v413 = vrot.slane %v408, %v412
    %v415 = vadd.f32 %v407, %v413
    %v416 = vld [vmem:[#allocation5] sm:$0xff]
    %v417 = vld [vmem:[#allocation5 + $0x8] sm:$0xff]
    %v418 = vld [vmem:[#allocation5 + $0x10] sm:$0xff]
    %v419 = vld [vmem:[#allocation5 + $0x18] sm:$0xff]
    %v420 = vld [vmem:[#allocation5 + $0x20] sm:$0xff]
    %v421 = vld [vmem:[#allocation5 + $0x28] sm:$0xff]
    %v422 = vld [vmem:[#allocation5 + $0x30] sm:$0xff]
    %v423 = vld [vmem:[#allocation5 + $0x38] sm:$0xff]
    %v424 = vld [vmem:[#allocation5 + $0x40] sm:$0xff]
    %v425 = vld [vmem:[#allocation5 + $0x48] sm:$0xff]
    %v426 = vld [vmem:[#allocation5 + $0x50] sm:$0xff]
    %v427 = vld [vmem:[#allocation5 + $0x58] sm:$0xff]
    %v428 = vld [vmem:[#allocation5 + $0x60] sm:$0xff]
    %v429 = vld [vmem:[#allocation5 + $0x68] sm:$0xff]
    %v430 = vld [vmem:[#allocation5 + $0x70] sm:$0xff]
    %v431 = vld [vmem:[#allocation5 + $0x78] sm:$0xff]
    %v432 = vld [vmem:[%s4] sm:$0x1]
    %v434 = vlaneseq
    %v435 = vshrl.u32 %v434, 7
    %v436 = vsub.s32 0, %v435
    %v437 = vrot.slane %v432, %v436
    %439 = vmatprep.subr.mxu0 0.0
    %440 = vmatpush1.msra.mxu0 %v416
    %441 = vmatprep.subr.mxu0 0.0
    %442 = vmatpush1.msra.mxu0 %v417
    %443 = vmatprep.subr.mxu0 0.0
    %444 = vmatpush1.msra.mxu0 %v418
    %445 = vmatprep.subr.mxu0 0.0
    %446 = vmatpush1.msra.mxu0 %v419
    %447 = vmatprep.subr.mxu0 0.0
    %448 = vmatpush1.msra.mxu0 %v420
    %449 = vmatprep.subr.mxu0 0.0
    %450 = vmatpush1.msra.mxu0 %v421
    %451 = vmatprep.subr.mxu0 0.0
    %452 = vmatpush1.msra.mxu0 %v422
    %453 = vmatprep.subr.mxu0 0.0
    %454 = vmatpush1.msra.mxu0 %v423
    %455 = vmatprep.subr.mxu0 0.0
    %456 = vmatpush1.msra.mxu0 %v424
    %457 = vmatprep.subr.mxu0 0.0
    %458 = vmatpush1.msra.mxu0 %v425
    %459 = vmatprep.subr.mxu0 0.0
    %460 = vmatpush1.msra.mxu0 %v426
    %461 = vmatprep.subr.mxu0 0.0
    %462 = vmatpush1.msra.mxu0 %v427
    %463 = vmatprep.subr.mxu0 0.0
    %464 = vmatpush1.msra.mxu0 %v428
    %465 = vmatprep.subr.mxu0 0.0
    %466 = vmatpush1.msra.mxu0 %v429
    %467 = vmatprep.subr.mxu0 0.0
    %468 = vmatpush1.msra.mxu0 %v430
    %469 = vmatprep.subr.mxu0 0.0
    %470 = vmatpush1.msra.mxu0 %v431
    %471 = vmatprep.subr.mxu0 0.0
    %472 = vmatpush1.msra.mxu0 0.0
    %473 = vmatprep.subr.mxu0 0.0
    %474 = vmatpush1.msra.mxu0 0.0
    %475 = vmatprep.subr.mxu0 0.0
    %476 = vmatpush1.msra.mxu0 0.0
    %477 = vmatprep.subr.mxu0 0.0
    %478 = vmatpush1.msra.mxu0 0.0
    %479 = vmatprep.subr.mxu0 0.0
    %480 = vmatpush1.msra.mxu0 0.0
    %481 = vmatprep.subr.mxu0 0.0
    %482 = vmatpush1.msra.mxu0 0.0
    %483 = vmatprep.subr.mxu0 0.0
    %484 = vmatpush1.msra.mxu0 0.0
    %485 = vmatprep.subr.mxu0 0.0
    %486 = vmatpush1.msra.mxu0 0.0
    %487 = vmatprep.subr.mxu0 0.0
    %488 = vmatpush1.msra.mxu0 0.0
    %489 = vmatprep.subr.mxu0 0.0
    %490 = vmatpush1.msra.mxu0 0.0
    %491 = vmatprep.subr.mxu0 0.0
    %492 = vmatpush1.msra.mxu0 0.0
    %493 = vmatprep.subr.mxu0 0.0
    %494 = vmatpush1.msra.mxu0 0.0
    %495 = vmatprep.subr.mxu0 0.0
    %496 = vmatpush1.msra.mxu0 0.0
    %497 = vmatprep.subr.mxu0 0.0
    %498 = vmatpush1.msra.mxu0 0.0
    %499 = vmatprep.subr.mxu0 0.0
    %500 = vmatpush1.msra.mxu0 0.0
    %501 = vmatprep.subr.mxu0 0.0
    %502 = vmatpush1.msra.mxu0 0.0
    %503 = vmatprep.mubr.f32.mxu0 0.0
    %504 = vmatmul.mubr.f32.gmra.mrb[0].mxu0 %v415
    %v505 = vpop.f32.mrb[0].mxu0
    %v506 = vadd.f32 %v437, %v505
    %v507 = vpop.f32.mrb[0].mxu0
    %508 = vdwg.mxu0
    %509 = vst [vmem:[#allocation7] sm:$0xff] %v506
    // Predicated region
    $region30: #{tpu_custom_call.1} parent=1 // pred_check
      _
    $region31: #{tpu_custom_call.1} parent=1 // pred_check_branch
      %511 = sbr.rel (0) target = $region33
    $region32: #{tpu_custom_call.1} parent=1 // pred_region
      %s513 = ssub.s32 128, 128
      %514 = vsyncadd [#allocation4], %s513
      %s516 = sshll.u32 [#allocation7], 4
      %s517 = int_to_ptr.vmem [resolvable:$true] %s516
      %519 = dma.vmem_to_hbm [thread:$0]  %s517, 128, %s5, [#allocation4]
    $region33: #{tpu_custom_call.1} parent=1 // pred_fallthru
      _
    // Predicated region
    $region34: #{tpu_custom_call.1} parent=1 // pred_check
      _
    $region35: #{tpu_custom_call.1} parent=1 // pred_check_branch
      %521 = sbr.rel (0) target = $region37
    $region36: #{tpu_custom_call.1} parent=1 // pred_region
      %522 = dma.done [#allocation4], 128
    $region37: #{tpu_custom_call.1} parent=1 // pred_fallthru
      _
    %523 = vsyncpa [#allocation3], 1
    %524 = vsyncpa [#allocation6], 1
    %525 = vsyncpa [#allocation4], 1

</llo_original>
